<compile_context>
chip_gen: v7x
topology: tpu7x:2x2x1
jax: 0.10.0
libtpu: 0.0.40
codegen_flags: <defaults>
</compile_context>

<pallas_src>
import functools

import jax
import jax.numpy as jnp
from jax.experimental import pallas as pl
from jax.experimental.pallas import tpu as pltpu


def _round_up(n, m):
    return ((n + m - 1) // m) * m


def _pad2d(a, rows, cols):
    return jnp.pad(a, ((0, rows - a.shape[0]), (0, cols - a.shape[1])))


# --------------------------------------------------------------------------- #
# Kernel
# --------------------------------------------------------------------------- #
def _mlp_disc_kernel(num_hidden, negative_slope, *refs):
    """refs = (x, w0_top, stem_row, [w_i, b_i]..., w_out, b_out, out)."""
    x_ref = refs[0]
    out_ref = refs[-1]
    p = refs[1:-1]

    # First layer: x @ W0_top (bf16 MXU, f32 acc) + precomputed full-batch
    # mean contribution (stem_row already includes b0).
    xb = x_ref[...].astype(jnp.bfloat16)                       # (TB, F)
    h = jnp.dot(xb, p[0][...], preferred_element_type=jnp.float32) + p[1][...]
    h = jnp.maximum(h, negative_slope * h)                     # LeakyReLU(0.2), f32

    # Remaining hidden layers.
    idx = 2
    for _ in range(num_hidden - 1):
        w = p[idx][...]                                        # bf16 (Hp_prev, Hp)
        b = p[idx + 1][...]                                    # f32  (1, Hp)
        idx += 2
        h = jnp.dot(h.astype(jnp.bfloat16), w,
                    preferred_element_type=jnp.float32) + b
        h = jnp.maximum(h, negative_slope * h)

    # Final linear with batch on lanes: contract the hidden dim of
    # (8, Hp_last) x (TB, Hp_last) -> (8, TB); only row 0 is real.
    w_out = p[idx][...]                                        # bf16 (8, Hp_last)
    b_out = p[idx + 1][...]                                    # f32  (1, 1)
    res = jax.lax.dot_general(
        w_out, h.astype(jnp.bfloat16),
        dimension_numbers=(((1,), (1,)), ((), ())),
        preferred_element_type=jnp.float32)                    # (8, TB)
    out_ref[...] = (res[0:1, :] + b_out).astype(out_ref.dtype)  # (1, TB) lane-dense


# --------------------------------------------------------------------------- #
# Parameter init (PyTorch nn.Linear-style) and one-time packing
# --------------------------------------------------------------------------- #
def init_mlp_discriminator_params(key, input_size, archs, output_size=1):
    """PyTorch-style Linear params: W is (out, in), b is (out,). Deterministic."""
    layer_sizes = [input_size] + list(archs) + [output_size]
    params = []
    for i in range(len(layer_sizes) - 1):
        fan_in, fan_out = layer_sizes[i], layer_sizes[i + 1]
        key, kw, kb = jax.random.split(key, 3)
        bound = 1.0 / float(jnp.sqrt(jnp.float32(fan_in)))
        w = jax.random.uniform(kw, (fan_out, fan_in), jnp.float32, -bound, bound)
        b = jax.random.uniform(kb, (fan_out,), jnp.float32, -bound, bound)
        params.append((w, b))
    return params


def pack_mlp_discriminator_params(params, feature_dim, lane=128, out_rows=8):
    """One-time: transpose to (in, out), zero-pad widths to 128, cast MXU
    operands to bf16. Biases / the mean-path weight stay f32. The final
    weight is kept in (out, in) layout (padded to 8 sublanes) so the kernel
    can contract the hidden dim with batch landing on lanes."""
    assert len(params) >= 2, "need at least one hidden layer (archs non-empty)"
    w0, b0 = params[0]
    h0 = int(w0.shape[0])
    assert int(w0.shape[1]) == 2 * feature_dim, \
        "first Linear expects input_size == 2 * feature dim"
    w0_t = jnp.asarray(w0, jnp.float32).T                      # (2F, H0)
    h0p = _round_up(h0, lane)
    w0_top = _pad2d(w0_t[:feature_dim], feature_dim, h0p).astype(jnp.bfloat16)
    w0_bot = _pad2d(w0_t[feature_dim:], feature_dim, h0p)      # f32, wrapper GEMV
    b0p = _pad2d(jnp.asarray(b0, jnp.float32).reshape(1, -1), 1, h0p)

    hidden = []
    prev_p = h0p
    for (w, b) in params[1:-1]:
        hi = int(w.shape[0])
        hip = _round_up(hi, lane)
        w_t = jnp.asarray(w, jnp.float32).T                    # (H_prev, Hi)
        hidden.append((
            _pad2d(w_t, prev_p, hip).astype(jnp.bfloat16),
            _pad2d(jnp.asarray(b, jnp.float32).reshape(1, -1), 1, hip),
        ))
        prev_p = hip

    w_last, b_last = params[-1]
    out_size = int(w_last.shape[0])
    # TODO(synk): output_size > 1 (no squeeze) not wired through the kernel.
    assert out_size == 1, "forward().squeeze(1) path implies output_size == 1"
    w_out = _pad2d(jnp.asarray(w_last, jnp.float32), out_rows, prev_p).astype(jnp.bfloat16)
    b_out = jnp.asarray(b_last, jnp.float32).reshape(1, 1)

    return dict(feature_dim=feature_dim, output_size=out_size,
                w0_top=w0_top, w0_bot=w0_bot, b0=b0p,
                hidden=tuple(hidden), w_out=w_out, b_out=b_out)


# --------------------------------------------------------------------------- #
# Batch-tile selection
# --------------------------------------------------------------------------- #
def _choose_batch_tile(B, batch_tile, max_tb):
    Bp8 = _round_up(B, 8)
    if batch_tile is not None:
        tb = max(8, _round_up(int(batch_tile), 8))
        if tb >= Bp8:
            return Bp8                       # single tile (block == full dims)
        tb = _round_up(tb, 128)              # multi-tile: lane-aligned out blocks
        return Bp8 if tb >= Bp8 else tb
    if Bp8 <= 256:
        return Bp8                           # tiny batch: one tile
    # Grow from 128 while VMEM allows and we keep >= 4 grid steps
    # (>= 2 steps per v7x TensorCore under "parallel" batch sharding).
    tb = 128
    while tb * 2 <= max_tb and _round_up(B, tb * 2) // (tb * 2) >= 4:
        tb *= 2
    return tb


# --------------------------------------------------------------------------- #
# Forward wrapper
# --------------------------------------------------------------------------- #
def mlp_discriminator_forward(x, packed, negative_slope=0.2, batch_tile=None):
    """x: (B, F) float32; packed: output of pack_mlp_discriminator_params.
    Returns (B,) float32, matching torch forward().squeeze(1)."""
    B, F = x.shape
    assert F == packed["feature_dim"]
    num_hidden = 1 + len(packed["hidden"])

    xf = x.astype(jnp.float32)
    # Mean contribution over the FULL batch (computed before any batch tiling /
    # padding — per-tile means inside the kernel would be wrong).
    mean = jnp.mean(xf, axis=0, keepdims=True)                 # (1, F)
    stem_row = mean @ packed["w0_bot"] + packed["b0"]          # (1, H0p) f32

    flat = [packed["w0_top"], stem_row]
    for (w, b) in packed["hidden"]:
        flat.extend([w, b])
    flat.extend([packed["w_out"], packed["b_out"]])

    weight_bytes = sum(int(a.size) * a.dtype.itemsize for a in flat)
    widths = [int(packed["w0_top"].shape[1])] + \
             [int(w.shape[1]) for (w, _) in packed["hidden"]]
    max_w = max(widths + [F, 128])

    # Generation-aware VMEM cap: physical capacity minus ~8 MiB headroom
    # (v5e/v6e: 128 MiB physical, v7x: 64 MiB per TensorCore).
    phys_vmem = 64 * 1024 * 1024
    try:
        info = pltpu.get_tpu_info()
        phys_vmem = int(getattr(info, "vmem_capacity_bytes", phys_vmem))
    except Exception:
        pass
    vmem_cap = max(16 * 1024 * 1024, phys_vmem - 8 * 1024 * 1024)

    # Batch tile sized from the VMEM budget (resident weights x2 buffers,
    # double-buffered x/out tiles, f32/bf16 activation scratch), capped at 2048.
    per_row_bytes = 2 * F * 4 + 2 * 4 + 6 * max_w * 4
    budget = max(0, vmem_cap - 2 * weight_bytes - 4 * 1024 * 1024)
    max_tb = int(max(128, min(2048, (budget // per_row_bytes // 128) * 128)))
    TB = _choose_batch_tile(B, batch_tile, max_tb)

    Bp = _round_up(B, TB)
    if Bp != B:
        xf = jnp.pad(xf, ((0, Bp - B), (0, 0)))
    grid = (Bp // TB,)

    # Specs: x tiled over batch (pipelined), weights resident (same block every
    # step -> re-copy elided), output stored as lane-dense (1, TB) rows.
    weight_specs = [pl.BlockSpec(a.shape, lambda i: (0, 0)) for a in flat]
    in_specs = [pl.BlockSpec((TB, F), lambda i: (i, 0))] + weight_specs
    out_specs = pl.BlockSpec((1, TB), lambda i: (0, i))

    vmem_est = (2 * weight_bytes + 2 * TB * F * 4 + 2 * TB * 4
                + 6 * TB * max_w * 4)
    vmem_limit = int(min(vmem_cap, max(16 * 1024 * 1024, vmem_est + (2 << 20))))

    dims = [(F, int(packed["w0_top"].shape[1]))] + \
           [(int(w.shape[0]), int(w.shape[1])) for (w, _) in packed["hidden"]] + \
           [(int(packed["w_out"].shape[1]), int(packed["w_out"].shape[0]))]
    flops = 2 * Bp * sum(a * b for a, b in dims)
    bytes_accessed = Bp * F * 4 + weight_bytes + Bp * 4

    kernel = functools.partial(_mlp_disc_kernel, num_hidden, negative_slope)
    out = pl.pallas_call(
        kernel,
        out_shape=jax.ShapeDtypeStruct((1, Bp), jnp.float32),
        grid=grid,
        in_specs=in_specs,
        out_specs=out_specs,
        compiler_params=pltpu.CompilerParams(
            dimension_semantics=("parallel",),
            vmem_limit_bytes=vmem_limit),
        cost_estimate=pl.CostEstimate(flops=int(flops), transcendentals=0,
                                      bytes_accessed=int(bytes_accessed)),
    )(xf, *flat)

    return out[0, :B]                                          # matches .squeeze(1)


# --------------------------------------------------------------------------- #
# Pure-JAX reference (f32, unfused, exactly the torch forward)
# --------------------------------------------------------------------------- #
def _reference_forward(x, params, negative_slope=0.2):
    mean = jnp.mean(x, axis=0, keepdims=True)
    h = jnp.concatenate([x, jnp.broadcast_to(mean, x.shape)], axis=1)
    for i, (w, b) in enumerate(params):
        h = h @ w.T + b
        if i < len(params) - 1:
            h = jnp.where(h >= 0, h, negative_slope * h)
    return h[:, 0]


if __name__ == "__main__":
    key = jax.random.PRNGKey(0)
    key, kx, kx2, kp = jax.random.split(key, 4)

    F = 16                         # feature dim F => module input_size = 2*F
    input_size = 2 * F
    archs = [32, 32]

    params = init_mlp_discriminator_params(kp, input_size, archs, output_size=1)
    packed = pack_mlp_discriminator_params(params, feature_dim=F)

    # Multi-tile path: B=384 -> TB=128, grid=(3,) (>=2 steps per v7x core).
    x = jax.random.normal(kx, (384, F), dtype=jnp.float32)
    out = jax.block_until_ready(mlp_discriminator_forward(x, packed))
    ref = _reference_forward(x, params)
    assert out.shape == (384,)
    # Kernel runs matmuls in bf16 (f32 accumulate); tolerance set accordingly.
    assert jnp.allclose(out, ref, atol=5e-2, rtol=5e-2), (out, ref)

    # Small / unaligned batch path: single tile, block == full dims.
    x2 = jax.random.normal(kx2, (24, F), dtype=jnp.float32)
    out2 = jax.block_until_ready(mlp_discriminator_forward(x2, packed))
    ref2 = _reference_forward(x2, params)
    assert out2.shape == (24,)
    assert jnp.allclose(out2, ref2, atol=5e-2, rtol=5e-2), (out2, ref2)

    print("KERNEL_OK")
</pallas_src>

<mosaic_0001>
module attributes {stable_mosaic.version = 11 : i64} {
  func.func @_mlp_disc_kernel(%arg0: i32, %arg1: memref<128x16xf32, #tpu.memory_space<vmem>>, %arg2: memref<16x128xbf16, #tpu.memory_space<vmem>>, %arg3: memref<1x128xf32, #tpu.memory_space<vmem>>, %arg4: memref<128x128xbf16, #tpu.memory_space<vmem>>, %arg5: memref<1x128xf32, #tpu.memory_space<vmem>>, %arg6: memref<8x128xbf16, #tpu.memory_space<vmem>>, %arg7: memref<1x1xf32, #tpu.memory_space<vmem>>, %arg8: memref<1x128xf32, #tpu.memory_space<vmem>>) attributes {dimension_semantics = [#tpu.dimension_semantics<parallel>], iteration_bounds = array<i64: 3>, scalar_prefetch = 0 : i64, scratch_operands = 0 : i64, tpu.core_type = #tpu.core_type<tc>, window_params = [{transform_indices = @transform_0, window_bounds = array<i64: 128, 16>}, {pipeline_mode = #tpu.pipeline_mode<synchronous>, transform_indices = @transform_1, window_bounds = array<i64: 16, 128>}, {pipeline_mode = #tpu.pipeline_mode<synchronous>, transform_indices = @transform_2, window_bounds = array<i64: 1, 128>}, {pipeline_mode = #tpu.pipeline_mode<synchronous>, transform_indices = @transform_3, window_bounds = array<i64: 128, 128>}, {pipeline_mode = #tpu.pipeline_mode<synchronous>, transform_indices = @transform_4, window_bounds = array<i64: 1, 128>}, {pipeline_mode = #tpu.pipeline_mode<synchronous>, transform_indices = @transform_5, window_bounds = array<i64: 8, 128>}, {pipeline_mode = #tpu.pipeline_mode<synchronous>, transform_indices = @transform_6, window_bounds = array<i64: 1, 1>}, {transform_indices = @transform_7, window_bounds = array<i64: 1, 128>}]} {
    %c0 = arith.constant 0 : index
    %c0_0 = arith.constant 0 : index
    %0 = vector.load %arg1[%c0, %c0_0] : memref<128x16xf32, #tpu.memory_space<vmem>>, vector<128x16xf32>
    %1 = arith.truncf %0 : vector<128x16xf32> to vector<128x16xbf16>
    %c0_1 = arith.constant 0 : index
    %c0_2 = arith.constant 0 : index
    %2 = vector.load %arg2[%c0_1, %c0_2] : memref<16x128xbf16, #tpu.memory_space<vmem>>, vector<16x128xbf16>
    %cst = arith.constant dense<0.000000e+00> : vector<128x128xf32>
    %3 = tpu.matmul %1, %2, %cst {dimension_numbers = #tpu.dot_dimension_numbers<[1], [0], [0], [1], [0, 0, 1, 1], [], []>} : vector<128x16xbf16>, vector<16x128xbf16>, vector<128x128xf32> -> vector<128x128xf32>
    %c0_3 = arith.constant 0 : index
    %c0_4 = arith.constant 0 : index
    %4 = vector.load %arg3[%c0_3, %c0_4] : memref<1x128xf32, #tpu.memory_space<vmem>>, vector<1x128xf32>
    %5 = vector.broadcast %4 : vector<1x128xf32> to vector<128x128xf32>
    %6 = arith.addf %3, %5 : vector<128x128xf32>
    %cst_5 = arith.constant 2.000000e-01 : f32
    %7 = vector.broadcast %cst_5 : f32 to vector<128x128xf32>
    %8 = arith.mulf %7, %6 : vector<128x128xf32>
    %9 = arith.maximumf %6, %8 : vector<128x128xf32>
    %c0_6 = arith.constant 0 : index
    %c0_7 = arith.constant 0 : index
    %10 = vector.load %arg4[%c0_6, %c0_7] : memref<128x128xbf16, #tpu.memory_space<vmem>>, vector<128x128xbf16>
    %c0_8 = arith.constant 0 : index
    %c0_9 = arith.constant 0 : index
    %11 = vector.load %arg5[%c0_8, %c0_9] : memref<1x128xf32, #tpu.memory_space<vmem>>, vector<1x128xf32>
    %12 = arith.truncf %9 : vector<128x128xf32> to vector<128x128xbf16>
    %cst_10 = arith.constant dense<0.000000e+00> : vector<128x128xf32>
    %13 = tpu.matmul %12, %10, %cst_10 {dimension_numbers = #tpu.dot_dimension_numbers<[1], [0], [0], [1], [0, 0, 1, 1], [], []>} : vector<128x128xbf16>, vector<128x128xbf16>, vector<128x128xf32> -> vector<128x128xf32>
    %14 = vector.broadcast %11 : vector<1x128xf32> to vector<128x128xf32>
    %15 = arith.addf %13, %14 : vector<128x128xf32>
    %cst_11 = arith.constant 2.000000e-01 : f32
    %16 = vector.broadcast %cst_11 : f32 to vector<128x128xf32>
    %17 = arith.mulf %16, %15 : vector<128x128xf32>
    %18 = arith.maximumf %15, %17 : vector<128x128xf32>
    %c0_12 = arith.constant 0 : index
    %c0_13 = arith.constant 0 : index
    %19 = vector.load %arg6[%c0_12, %c0_13] : memref<8x128xbf16, #tpu.memory_space<vmem>>, vector<8x128xbf16>
    %c0_14 = arith.constant 0 : index
    %c0_15 = arith.constant 0 : index
    %20 = vector.load %arg7[%c0_14, %c0_15] : memref<1x1xf32, #tpu.memory_space<vmem>>, vector<1x1xf32>
    %21 = arith.truncf %18 : vector<128x128xf32> to vector<128x128xbf16>
    %cst_16 = arith.constant dense<0.000000e+00> : vector<8x128xf32>
    %22 = tpu.matmul %19, %21, %cst_16 {dimension_numbers = #tpu.dot_dimension_numbers<[1], [1], [0], [0], [0, 0, 1, 0], [], []>} : vector<8x128xbf16>, vector<128x128xbf16>, vector<8x128xf32> -> vector<8x128xf32>
    %23 = vector.extract_strided_slice %22 {offsets = [0, 0], sizes = [1, 128], strides = [1, 1]} : vector<8x128xf32> to vector<1x128xf32>
    %24 = vector.broadcast %20 : vector<1x1xf32> to vector<1x128xf32>
    %25 = arith.addf %23, %24 : vector<1x128xf32>
    %c0_17 = arith.constant 0 : index
    %c0_18 = arith.constant 0 : index
    %26 = vector.load %arg8[%c0_17, %c0_18] : memref<1x128xf32, #tpu.memory_space<vmem>>, vector<1x128xf32>
    tpu.vector_store %arg8[%c0_17, %c0_18], %25 {strides = array<i32>} : memref<1x128xf32, #tpu.memory_space<vmem>>, vector<1x128xf32>,
    return
  }
  func.func @transform_0(%arg0: i32) -> (i32, i32) {
    %c0_i32 = arith.constant 0 : i32
    %c0_i32_0 = arith.constant 0 : i32
    return %arg0, %c0_i32 : i32, i32
  }
  func.func @transform_1(%arg0: i32) -> (i32, i32) {
    %c0_i32 = arith.constant 0 : i32
    %c0_i32_0 = arith.constant 0 : i32
    %c0_i32_1 = arith.constant 0 : i32
    return %c0_i32, %c0_i32_0 : i32, i32
  }
  func.func @transform_2(%arg0: i32) -> (i32, i32) {
    %c0_i32 = arith.constant 0 : i32
    %c0_i32_0 = arith.constant 0 : i32
    %c0_i32_1 = arith.constant 0 : i32
    return %c0_i32, %c0_i32_0 : i32, i32
  }
  func.func @transform_3(%arg0: i32) -> (i32, i32) {
    %c0_i32 = arith.constant 0 : i32
    %c0_i32_0 = arith.constant 0 : i32
    %c0_i32_1 = arith.constant 0 : i32
    return %c0_i32, %c0_i32_0 : i32, i32
  }
  func.func @transform_4(%arg0: i32) -> (i32, i32) {
    %c0_i32 = arith.constant 0 : i32
    %c0_i32_0 = arith.constant 0 : i32
    %c0_i32_1 = arith.constant 0 : i32
    return %c0_i32, %c0_i32_0 : i32, i32
  }
  func.func @transform_5(%arg0: i32) -> (i32, i32) {
    %c0_i32 = arith.constant 0 : i32
    %c0_i32_0 = arith.constant 0 : i32
    %c0_i32_1 = arith.constant 0 : i32
    return %c0_i32, %c0_i32_0 : i32, i32
  }
  func.func @transform_6(%arg0: i32) -> (i32, i32) {
    %c0_i32 = arith.constant 0 : i32
    %c0_i32_0 = arith.constant 0 : i32
    %c0_i32_1 = arith.constant 0 : i32
    return %c0_i32, %c0_i32_0 : i32, i32
  }
  func.func @transform_7(%arg0: i32) -> (i32, i32) {
    %c0_i32 = arith.constant 0 : i32
    %c0_i32_0 = arith.constant 0 : i32
    return %c0_i32, %arg0 : i32, i32
  }
}

</mosaic_0001>

<llo_original>
// kernel: tpu_custom_call.1
$region0: #{tpu_custom_call.1}
  #allocation0 [shape = 'u32[]', space=smem, size = 0x4, offset = 0x4, fixed_abs, tag = 'smem constant byte address 0x4 - core index']
  #allocation1 [shape = 'u32[144,128]{1,0:T(1,128)}', space=vmem, size = 0x12000, scoped, tag = 'internal scratch']
  #allocation2 [shape = 'f32[1,1]{1,0:T(1,128)S(1)}', space=vmem, size = 0x200, scoped, tag = 'scoped memory for tpu_custom_call.1']
  %s0 = inlined_call_operand.vmem [shape: f32[384,16], index: 0, kind: input, shape index: {}]
  %s1 = inlined_call_operand.vmem [shape: bf16[16,128], index: 1, kind: input, shape index: {}]
  %s2 = inlined_call_operand.vmem [shape: f32[1,128], index: 2, kind: input, shape index: {}]
  %s3 = inlined_call_operand.vmem [shape: bf16[128,128], index: 3, kind: input, shape index: {}]
  %s4 = inlined_call_operand.vmem [shape: f32[1,128], index: 4, kind: input, shape index: {}]
  %s5 = inlined_call_operand.vmem [shape: bf16[8,128], index: 5, kind: input, shape index: {}]
  %s6 = inlined_call_operand.<no memory space> [shape: f32[1,1], index: 6, kind: input, shape index: {}]
  %s7 = inlined_call_operand.hbm [shape: f32[1,384], index: 7, kind: output, shape index: {}]
  %s8 = sld [smem:[#allocation0]]
  $region61: #{tpu_custom_call.1} parent=0
    _
  %s10 = ssub.s32 1, %s8
  %s11 = scalar_select 0, %s10, %s8
  %v12 = vstv %s6
  %13 = vst [vmem:[#allocation2] sm:$0x1] %v12
  $region1: #{tpu_custom_call.1} parent=0
    #allocation3 [shape = 'u8[1024]{0}', space=vmem, size = 0x400, scoped, tag = 'output window, operand 0']
    #allocation4 [shape = 's32[2]{0}', space=sflag, size = 0x8, scoped, tag = 'scoped memory for tpu_custom_call.1']
    %14 = vsyncpa [#allocation4], 0
    %s15 = scalar_lea.sflag [#allocation4], 1
    %16 = vsyncpa %s15, 0
    loop: start=0, step=1, limit=5
    $region2: #{tpu_custom_call.1} parent=1 // loop_pre_header
      _
    $region3: #{tpu_custom_call.1} parent=1 // loop_header
      %s18 = sphi 0, %s22
      %p19 = scmp.ge.s32.totalorder %s18, 5
      %s28 = sphi 0, %s30
      %s31 = sphi 0, %s28
      %s32 = sphi 0, %s31
      %s48 = sphi 0, %s32
      %s52 = sphi 0, %s52
      %s54 = sphi 0, %s52
      %s55 = sphi 0, %s54
      %s69 = sphi 0, %s55
      %s73 = sphi 0, %s73
      %s75 = sphi 0, %s73
      %s76 = sphi 0, %s75
      %s90 = sphi 0, %s76
      %s94 = sphi 0, %s94
      %s96 = sphi 0, %s94
      %s97 = sphi 0, %s96
      %s111 = sphi 0, %s97
      %s115 = sphi 0, %s115
      %s117 = sphi 0, %s115
      %s118 = sphi 0, %s117
      %s132 = sphi 0, %s118
      %s136 = sphi 0, %s136
      %s138 = sphi 0, %s136
      %s139 = sphi 0, %s138
      %s153 = sphi 0, %s139
      %s157 = sphi 0, %s157
      %s159 = sphi 0, %s157
      %s160 = sphi 0, %s159
      %s174 = sphi 0, %s160
      %s180 = sphi 0, %s182
      %s183 = sphi 0, %s180
      %s184 = sphi 0, %s183
      %s200 = sphi 0, %s184
    $region4: #{tpu_custom_call.1} parent=1 // loop_header_branch
      %21 = sbr.rel (%p19) target = $region8
    $region5: #{tpu_custom_call.1} parent=1 // loop_body
      %s23 = ssub.s32 %s18, 1
      %s24 = ssub.s32 %s18, 2
      %s25 = sadd.s32 %s18, 1
      %s26 = ssub.s32 %s18, %s25
      %p27 = scmp.eq.s32.totalorder %s26, 0
      %s29 = sadd.s32 %s28, 1
      %s30 = scalar_select %p27, %s28, %s29
      %p33 = pneg %p27
      %p34 = scmp.eq.s32.totalorder %s18, 2
      %p35 = por %p33, %p34
      %p36 = scmp.ne.s32.totalorder %s28, %s31
      %p37 = scmp.eq.s32.totalorder %s18, 0
      %p38 = por %p36, %p37
      %p39 = scmp.ne.s32.totalorder %s28, %s31
      %p40 = scmp.eq.s32.totalorder %s23, 2
      %p41 = por %p39, %p40
      %p42 = scmp.ne.s32.totalorder %s31, %s32
      %p43 = scmp.eq.s32.totalorder %s23, 0
      %p44 = por %p42, %p43
      %p45 = scmp.ne.s32.totalorder %s31, %s32
      %p46 = scmp.eq.s32.totalorder %s24, 2
      %p47 = por %p45, %p46
      %p49 = scmp.ne.s32.totalorder %s32, %s48
      %p50 = scmp.eq.s32.totalorder %s24, 0
      %p51 = por %p49, %p50
      %s53 = sadd.s32 %s52, 1
      %p56 = scmp.eq.s32.totalorder %s18, 2
      %p57 = scmp.ne.s32.totalorder %s52, %s54
      %p58 = scmp.eq.s32.totalorder %s18, 0
      %p59 = por %p57, %p58
      %p60 = scmp.ne.s32.totalorder %s52, %s54
      %p61 = scmp.eq.s32.totalorder %s23, 2
      %p62 = por %p60, %p61
      %p63 = scmp.ne.s32.totalorder %s54, %s55
      %p64 = scmp.eq.s32.totalorder %s23, 0
      %p65 = por %p63, %p64
      %p66 = scmp.ne.s32.totalorder %s54, %s55
      %p67 = scmp.eq.s32.totalorder %s24, 2
      %p68 = por %p66, %p67
      %p70 = scmp.ne.s32.totalorder %s55, %s69
      %p71 = scmp.eq.s32.totalorder %s24, 0
      %p72 = por %p70, %p71
      %s74 = sadd.s32 %s73, 1
      %p77 = scmp.eq.s32.totalorder %s18, 2
      %p78 = scmp.ne.s32.totalorder %s73, %s75
      %p79 = scmp.eq.s32.totalorder %s18, 0
      %p80 = por %p78, %p79
      %p81 = scmp.ne.s32.totalorder %s73, %s75
      %p82 = scmp.eq.s32.totalorder %s23, 2
      %p83 = por %p81, %p82
      %p84 = scmp.ne.s32.totalorder %s75, %s76
      %p85 = scmp.eq.s32.totalorder %s23, 0
      %p86 = por %p84, %p85
      %p87 = scmp.ne.s32.totalorder %s75, %s76
      %p88 = scmp.eq.s32.totalorder %s24, 2
      %p89 = por %p87, %p88
      %p91 = scmp.ne.s32.totalorder %s76, %s90
      %p92 = scmp.eq.s32.totalorder %s24, 0
      %p93 = por %p91, %p92
      %s95 = sadd.s32 %s94, 1
      %p98 = scmp.eq.s32.totalorder %s18, 2
      %p99 = scmp.ne.s32.totalorder %s94, %s96
      %p100 = scmp.eq.s32.totalorder %s18, 0
      %p101 = por %p99, %p100
      %p102 = scmp.ne.s32.totalorder %s94, %s96
      %p103 = scmp.eq.s32.totalorder %s23, 2
      %p104 = por %p102, %p103
      %p105 = scmp.ne.s32.totalorder %s96, %s97
      %p106 = scmp.eq.s32.totalorder %s23, 0
      %p107 = por %p105, %p106
      %p108 = scmp.ne.s32.totalorder %s96, %s97
      %p109 = scmp.eq.s32.totalorder %s24, 2
      %p110 = por %p108, %p109
      %p112 = scmp.ne.s32.totalorder %s97, %s111
      %p113 = scmp.eq.s32.totalorder %s24, 0
      %p114 = por %p112, %p113
      %s116 = sadd.s32 %s115, 1
      %p119 = scmp.eq.s32.totalorder %s18, 2
      %p120 = scmp.ne.s32.totalorder %s115, %s117
      %p121 = scmp.eq.s32.totalorder %s18, 0
      %p122 = por %p120, %p121
      %p123 = scmp.ne.s32.totalorder %s115, %s117
      %p124 = scmp.eq.s32.totalorder %s23, 2
      %p125 = por %p123, %p124
      %p126 = scmp.ne.s32.totalorder %s117, %s118
      %p127 = scmp.eq.s32.totalorder %s23, 0
      %p128 = por %p126, %p127
      %p129 = scmp.ne.s32.totalorder %s117, %s118
      %p130 = scmp.eq.s32.totalorder %s24, 2
      %p131 = por %p129, %p130
      %p133 = scmp.ne.s32.totalorder %s118, %s132
      %p134 = scmp.eq.s32.totalorder %s24, 0
      %p135 = por %p133, %p134
      %s137 = sadd.s32 %s136, 1
      %p140 = scmp.eq.s32.totalorder %s18, 2
      %p141 = scmp.ne.s32.totalorder %s136, %s138
      %p142 = scmp.eq.s32.totalorder %s18, 0
      %p143 = por %p141, %p142
      %p144 = scmp.ne.s32.totalorder %s136, %s138
      %p145 = scmp.eq.s32.totalorder %s23, 2
      %p146 = por %p144, %p145
      %p147 = scmp.ne.s32.totalorder %s138, %s139
      %p148 = scmp.eq.s32.totalorder %s23, 0
      %p149 = por %p147, %p148
      %p150 = scmp.ne.s32.totalorder %s138, %s139
      %p151 = scmp.eq.s32.totalorder %s24, 2
      %p152 = por %p150, %p151
      %p154 = scmp.ne.s32.totalorder %s139, %s153
      %p155 = scmp.eq.s32.totalorder %s24, 0
      %p156 = por %p154, %p155
      %s158 = sadd.s32 %s157, 1
      %p161 = scmp.eq.s32.totalorder %s18, 2
      %p162 = scmp.ne.s32.totalorder %s157, %s159
      %p163 = scmp.eq.s32.totalorder %s18, 0
      %p164 = por %p162, %p163
      %p165 = scmp.ne.s32.totalorder %s157, %s159
      %p166 = scmp.eq.s32.totalorder %s23, 2
      %p167 = por %p165, %p166
      %p168 = scmp.ne.s32.totalorder %s159, %s160
      %p169 = scmp.eq.s32.totalorder %s23, 0
      %p170 = por %p168, %p169
      %p171 = scmp.ne.s32.totalorder %s159, %s160
      %p172 = scmp.eq.s32.totalorder %s24, 2
      %p173 = por %p171, %p172
      %p175 = scmp.ne.s32.totalorder %s160, %s174
      %p176 = scmp.eq.s32.totalorder %s24, 0
      %p177 = por %p175, %p176
      %s178 = ssub.s32 %s18, %s25
      %p179 = scmp.eq.s32.totalorder %s178, 0
      %s181 = sadd.s32 %s180, 1
      %s182 = scalar_select %p179, %s180, %s181
      %p185 = pneg %p179
      %p186 = scmp.eq.s32.totalorder %s18, 2
      %p187 = por %p185, %p186
      %p188 = scmp.ne.s32.totalorder %s180, %s183
      %p189 = scmp.eq.s32.totalorder %s18, 0
      %p190 = por %p188, %p189
      %p191 = scmp.ne.s32.totalorder %s180, %s183
      %p192 = scmp.eq.s32.totalorder %s23, 2
      %p193 = por %p191, %p192
      %p194 = scmp.ne.s32.totalorder %s183, %s184
      %p195 = scmp.eq.s32.totalorder %s23, 0
      %p196 = por %p194, %p195
      %p197 = scmp.ne.s32.totalorder %s183, %s184
      %p198 = scmp.eq.s32.totalorder %s24, 2
      %p199 = por %p197, %p198
      %p201 = scmp.ne.s32.totalorder %s184, %s200
      %p202 = scmp.eq.s32.totalorder %s24, 0
      %p203 = por %p201, %p202
      %p204 = scmp.le.s32.totalorder 1, %s18
      %p205 = scmp.lt.s32.totalorder %s18, 4
      %p206 = pnand %p204, %p205
      %p207 = pneg %p206
      // Predicated region
      $region9: #{tpu_custom_call.1} parent=5 // pred_check
        _
      $region10: #{tpu_custom_call.1} parent=5 // pred_check_branch
        %209 = sbr.rel (%p206) target = $region12
      $region11: #{tpu_custom_call.1} parent=5 // pred_region
        %s210 = ssub.s32 %s18, 1
        // Predicated region
        $region13: #{tpu_custom_call.1} parent=11 // pred_check
          %p211 = pneg %p65
        $region14: #{tpu_custom_call.1} parent=11 // pred_check_branch
          %213 = sbr.rel (%p211) target = $region16
        $region15: #{tpu_custom_call.1} parent=11 // pred_region
          _
        $region16: #{tpu_custom_call.1} parent=11 // pred_fallthru
          _
        // Predicated region
        $region17: #{tpu_custom_call.1} parent=11 // pred_check
          %p214 = pneg %p86
        $region18: #{tpu_custom_call.1} parent=11 // pred_check_branch
          %216 = sbr.rel (%p214) target = $region20
        $region19: #{tpu_custom_call.1} parent=11 // pred_region
          _
        $region20: #{tpu_custom_call.1} parent=11 // pred_fallthru
          _
        // Predicated region
        $region21: #{tpu_custom_call.1} parent=11 // pred_check
          %p217 = pneg %p107
        $region22: #{tpu_custom_call.1} parent=11 // pred_check_branch
          %219 = sbr.rel (%p217) target = $region24
        $region23: #{tpu_custom_call.1} parent=11 // pred_region
          _
        $region24: #{tpu_custom_call.1} parent=11 // pred_fallthru
          _
        // Predicated region
        $region25: #{tpu_custom_call.1} parent=11 // pred_check
          %p220 = pneg %p128
        $region26: #{tpu_custom_call.1} parent=11 // pred_check_branch
          %222 = sbr.rel (%p220) target = $region28
        $region27: #{tpu_custom_call.1} parent=11 // pred_region
          _
        $region28: #{tpu_custom_call.1} parent=11 // pred_fallthru
          _
        // Predicated region
        $region29: #{tpu_custom_call.1} parent=11 // pred_check
          %p223 = pneg %p149
        $region30: #{tpu_custom_call.1} parent=11 // pred_check_branch
          %225 = sbr.rel (%p223) target = $region32
        $region31: #{tpu_custom_call.1} parent=11 // pred_region
          _
        $region32: #{tpu_custom_call.1} parent=11 // pred_fallthru
          _
        // Predicated region
        $region33: #{tpu_custom_call.1} parent=11 // pred_check
          %p226 = pneg %p170
        $region34: #{tpu_custom_call.1} parent=11 // pred_check_branch
          %228 = sbr.rel (%p226) target = $region36
        $region35: #{tpu_custom_call.1} parent=11 // pred_region
          _
        $region36: #{tpu_custom_call.1} parent=11 // pred_fallthru
          _
      $region12: #{tpu_custom_call.1} parent=5 // pred_fallthru
        _
      %p229 = scmp.lt.s32.totalorder %s18, 3
      // Predicated region
      $region37: #{tpu_custom_call.1} parent=5 // pred_check
        %p230 = pneg %p229
      $region38: #{tpu_custom_call.1} parent=5 // pred_check_branch
        %232 = sbr.rel (%p230) target = $region40
      $region39: #{tpu_custom_call.1} parent=5 // pred_region
        // Predicated region
        $region41: #{tpu_custom_call.1} parent=39 // pred_check
          %p233 = pneg %p38
        $region42: #{tpu_custom_call.1} parent=39 // pred_check_branch
          %235 = sbr.rel (%p233) target = $region44
        $region43: #{tpu_custom_call.1} parent=39 // pred_region
          %s236 = smul.u32 16, %s18
          %p237 = scmp.lt.s32.totalorder %s236, 47
          %s238 = scalar_select %p237, %s236, 47
          %s239 = smul.addr %s238, 8
          %s240 = scalar_lea.vmem %s0, %s239
          %s241 = smul.u32 16, %s18
        $region44: #{tpu_custom_call.1} parent=39 // pred_fallthru
          _
      $region40: #{tpu_custom_call.1} parent=5 // pred_fallthru
        _
      %p242 = scmp.le.s32.totalorder 1, %s18
      %p243 = scmp.lt.s32.totalorder %s18, 4
      %p244 = pnand %p242, %p243
      %p245 = pneg %p244
      // Predicated region
      $region45: #{tpu_custom_call.1} parent=5 // pred_check
        _
      $region46: #{tpu_custom_call.1} parent=5 // pred_check_branch
        %247 = sbr.rel (%p244) target = $region48
      $region47: #{tpu_custom_call.1} parent=5 // pred_region
        %s248 = ssub.s32 %s18, 1
        %s249 = smul.u32 16, %s23
        %p250 = scmp.lt.s32.totalorder %s249, 47
        %s251 = scalar_select %p250, %s249, 47
        %s252 = smul.addr %s251, 8
        %s253 = scalar_lea.vmem %s0, %s252
        %p254 = pneg %p44
        %p255 = pneg %p41
        %p256 = pneg %p65
        %p257 = pneg %p62
        %p258 = pneg %p86
        %p259 = pneg %p83
        %p260 = pneg %p107
        %p261 = pneg %p104
        %p262 = pneg %p128
        %p263 = pneg %p125
        %p264 = pneg %p149
        %p265 = pneg %p146
        %p266 = pneg %p170
        %p267 = pneg %p167
        %p268 = pneg %p196
        %p269 = pneg %p193
        %s270 = sand.u32 %s183, 1
        %s271 = scalar_lea.sflag [#allocation4], %s270
        %s272 = sand.u32 %s183, 1
        %s273 = scalar_lea.vmem [#allocation3], %s272
        %s274 = smul.u32 16, %s23
        %p275 = scmp.lt.s32.totalorder %s274, 47
        %s276 = scalar_select %p275, %s274, 47
        %s277 = smul.addr %s276, 8
        %s278 = scalar_lea.vmem %s0, %s277
        %s279 = smul.u32 16, %s23
        %v281 = vld [vmem:[%s278] sm:$0xff]
        %v282 = vld [vmem:[%s278 + $0x8] sm:$0xff]
        %v283 = vld [vmem:[%s278 + $0x10] sm:$0xff]
        %v284 = vld [vmem:[%s278 + $0x18] sm:$0xff]
        %v285 = vld [vmem:[%s278 + $0x20] sm:$0xff]
        %v286 = vld [vmem:[%s278 + $0x28] sm:$0xff]
        %v287 = vld [vmem:[%s278 + $0x30] sm:$0xff]
        %v288 = vld [vmem:[%s278 + $0x38] sm:$0xff]
        %v289 = vld [vmem:[%s278 + $0x40] sm:$0xff]
        %v290 = vld [vmem:[%s278 + $0x48] sm:$0xff]
        %v291 = vld [vmem:[%s278 + $0x50] sm:$0xff]
        %v292 = vld [vmem:[%s278 + $0x58] sm:$0xff]
        %v293 = vld [vmem:[%s278 + $0x60] sm:$0xff]
        %v294 = vld [vmem:[%s278 + $0x68] sm:$0xff]
        %v295 = vld [vmem:[%s278 + $0x70] sm:$0xff]
        %v296 = vld [vmem:[%s278 + $0x78] sm:$0xff]
        %v297 = vpack.c.bf16 %v282, %v281
        %v298 = vpack.c.bf16 %v284, %v283
        %v299 = vpack.c.bf16 %v286, %v285
        %v300 = vpack.c.bf16 %v288, %v287
        %v301 = vpack.c.bf16 %v290, %v289
        %v302 = vpack.c.bf16 %v292, %v291
        %v303 = vpack.c.bf16 %v294, %v293
        %v304 = vpack.c.bf16 %v296, %v295
        %v305 = vld [vmem:[%s1] sm:$0xf]
        %v306 = vld [vmem:[%s1 + $0x4] sm:$0xf]
        %v307 = vld [vmem:[%s2] sm:$0x1]
        %v309 = vlaneseq
        %v310 = vshrl.u32 %v309, 7
        %v311 = vsub.s32 0, %v310
        %v312 = vrot.slane %v307, %v311
        %v316 = vunpack.c.l.b16 %v305
        %v317 = vunpack.c.l.b16 %v306
        %v318 = vpack.c.b16 %v317, %v316
        %vm320 = vcmask 130048
        %v322 = vsel %vm320, %v297, 0
        %v325 = vsel %vm320, %v298, 0
        %v328 = vsel %vm320, %v299, 0
        %v331 = vsel %vm320, %v300, 0
        %v334 = vsel %vm320, %v301, 0
        %v337 = vsel %vm320, %v302, 0
        %v340 = vsel %vm320, %v303, 0
        %v343 = vsel %vm320, %v304, 0
        %345 = vmatprep.subr.bf16.mxu0 0
        %346 = vmatpush1.bf16.msra.mxu0 %v318
        %347 = vmatprep.subr.bf16.mxu0 0
        %348 = vmatpush1.bf16.msra.mxu0 0
        %349 = vmatprep.subr.bf16.mxu0 0
        %350 = vmatpush1.bf16.msra.mxu0 0
        %351 = vmatprep.subr.bf16.mxu0 0
        %352 = vmatpush1.bf16.msra.mxu0 0
        %353 = vmatprep.subr.bf16.mxu0 0
        %354 = vmatpush1.bf16.msra.mxu0 0
        %355 = vmatprep.subr.bf16.mxu0 0
        %356 = vmatpush1.bf16.msra.mxu0 0
        %357 = vmatprep.subr.bf16.mxu0 0
        %358 = vmatpush1.bf16.msra.mxu0 0
        %359 = vmatprep.subr.bf16.mxu0 0
        %360 = vmatpush1.bf16.msra.mxu0 0
        %361 = vmatprep.subr.bf16.mxu0 0
        %362 = vmatpush1.bf16.msra.mxu0 0
        %363 = vmatprep.subr.bf16.mxu0 0
        %364 = vmatpush1.bf16.msra.mxu0 0
        %365 = vmatprep.subr.bf16.mxu0 0
        %366 = vmatpush1.bf16.msra.mxu0 0
        %367 = vmatprep.subr.bf16.mxu0 0
        %368 = vmatpush1.bf16.msra.mxu0 0
        %369 = vmatprep.subr.bf16.mxu0 0
        %370 = vmatpush1.bf16.msra.mxu0 0
        %371 = vmatprep.subr.bf16.mxu0 0
        %372 = vmatpush1.bf16.msra.mxu0 0
        %373 = vmatprep.subr.bf16.mxu0 0
        %374 = vmatpush1.bf16.msra.mxu0 0
        %375 = vmatprep.subr.bf16.mxu0 0
        %376 = vmatpush1.bf16.msra.mxu0 0
        %377 = vmatprep.mubr.bf16.mxu0 0
        %378 = vmatmul.mubr.bf16.gmra.mrb[0].mxu0 %v322
        %v379 = vpop.f32.mrb[0].mxu0
        %v380 = vadd.f32 %v312, %v379
        %v381 = vpop.f32.mrb[0].mxu0
        %v382 = vpop.f32.mrb[0].mxu0
        %v383 = vadd.f32 %v312, %v382
        %v384 = vpop.f32.mrb[0].mxu0
        %385 = vmatprep.mubr.bf16.mxu0 0
        %386 = vmatmul.mubr.bf16.gmra.mrb[0].mxu0 %v325
        %v387 = vpop.f32.mrb[0].mxu0
        %v388 = vadd.f32 %v312, %v387
        %v389 = vpop.f32.mrb[0].mxu0
        %v390 = vpop.f32.mrb[0].mxu0
        %v391 = vadd.f32 %v312, %v390
        %v392 = vpop.f32.mrb[0].mxu0
        %393 = vmatprep.mubr.bf16.mxu0 0
        %394 = vmatmul.mubr.bf16.gmra.mrb[0].mxu0 %v328
        %v395 = vpop.f32.mrb[0].mxu0
        %v396 = vadd.f32 %v312, %v395
        %v397 = vpop.f32.mrb[0].mxu0
        %v398 = vpop.f32.mrb[0].mxu0
        %v399 = vadd.f32 %v312, %v398
        %v400 = vpop.f32.mrb[0].mxu0
        %401 = vmatprep.mubr.bf16.mxu0 0
        %402 = vmatmul.mubr.bf16.gmra.mrb[0].mxu0 %v331
        %v403 = vpop.f32.mrb[0].mxu0
        %v404 = vadd.f32 %v312, %v403
        %v405 = vpop.f32.mrb[0].mxu0
        %v406 = vpop.f32.mrb[0].mxu0
        %v407 = vadd.f32 %v312, %v406
        %v408 = vpop.f32.mrb[0].mxu0
        %409 = vmatprep.mubr.bf16.mxu0 0
        %410 = vmatmul.mubr.bf16.gmra.mrb[0].mxu0 %v334
        %v411 = vpop.f32.mrb[0].mxu0
        %v412 = vadd.f32 %v312, %v411
        %v413 = vpop.f32.mrb[0].mxu0
        %v414 = vpop.f32.mrb[0].mxu0
        %v415 = vadd.f32 %v312, %v414
        %v416 = vpop.f32.mrb[0].mxu0
        %417 = vmatprep.mubr.bf16.mxu0 0
        %418 = vmatmul.mubr.bf16.gmra.mrb[0].mxu0 %v337
        %v419 = vpop.f32.mrb[0].mxu0
        %v420 = vadd.f32 %v312, %v419
        %v421 = vpop.f32.mrb[0].mxu0
        %v422 = vpop.f32.mrb[0].mxu0
        %v423 = vadd.f32 %v312, %v422
        %v424 = vpop.f32.mrb[0].mxu0
        %425 = vmatprep.mubr.bf16.mxu0 0
        %426 = vmatmul.mubr.bf16.gmra.mrb[0].mxu0 %v340
        %v427 = vpop.f32.mrb[0].mxu0
        %v428 = vadd.f32 %v312, %v427
        %v429 = vpop.f32.mrb[0].mxu0
        %v430 = vpop.f32.mrb[0].mxu0
        %v431 = vadd.f32 %v312, %v430
        %v432 = vpop.f32.mrb[0].mxu0
        %433 = vmatprep.mubr.bf16.mxu0 0
        %434 = vmatmul.mubr.bf16.gmra.mrb[0].mxu0 %v343
        %v435 = vpop.f32.mrb[0].mxu0
        %v436 = vadd.f32 %v312, %v435
        %v437 = vpop.f32.mrb[0].mxu0
        %v438 = vpop.f32.mrb[0].mxu0
        %v439 = vadd.f32 %v312, %v438
        %v440 = vpop.f32.mrb[0].mxu0
        %441 = vdwg.mxu0
        %v442 = vmul.f32 %v380, 0.2
        %v443 = vmul.f32 %v383, 0.2
        %v444 = vmul.f32 %v388, 0.2
        %v445 = vmul.f32 %v391, 0.2
        %v446 = vmul.f32 %v396, 0.2
        %v447 = vmul.f32 %v399, 0.2
        %v448 = vmul.f32 %v404, 0.2
        %v449 = vmul.f32 %v407, 0.2
        %v450 = vmul.f32 %v412, 0.2
        %v451 = vmul.f32 %v415, 0.2
        %v452 = vmul.f32 %v420, 0.2
        %v453 = vmul.f32 %v423, 0.2
        %v454 = vmul.f32 %v428, 0.2
        %v455 = vmul.f32 %v431, 0.2
        %v456 = vmul.f32 %v436, 0.2
        %v457 = vmul.f32 %v439, 0.2
        %v458 = vmax.f32 %v380, %v442
        %v459 = vmax.f32 %v383, %v443
        %v460 = vmax.f32 %v388, %v444
        %v461 = vmax.f32 %v391, %v445
        %v462 = vmax.f32 %v396, %v446
        %v463 = vmax.f32 %v399, %v447
        %v464 = vmax.f32 %v404, %v448
        %v465 = vmax.f32 %v407, %v449
        %v466 = vmax.f32 %v412, %v450
        %v467 = vmax.f32 %v415, %v451
        %v468 = vmax.f32 %v420, %v452
        %v469 = vmax.f32 %v423, %v453
        %v470 = vmax.f32 %v428, %v454
        %v471 = vmax.f32 %v431, %v455
        %v472 = vmax.f32 %v436, %v456
        %v473 = vmax.f32 %v439, %v457
        %v474 = vld [vmem:[%s3] sm:$0xf]
        %v475 = vld [vmem:[%s3 + $0x4] sm:$0xf]
        %v476 = vld [vmem:[%s3 + $0x8] sm:$0xf]
        %v477 = vld [vmem:[%s3 + $0xc] sm:$0xf]
        %v478 = vld [vmem:[%s3 + $0x10] sm:$0xf]
        %v479 = vld [vmem:[%s3 + $0x14] sm:$0xf]
        %v480 = vld [vmem:[%s3 + $0x18] sm:$0xf]
        %v481 = vld [vmem:[%s3 + $0x1c] sm:$0xf]
        %v482 = vld [vmem:[%s3 + $0x20] sm:$0xf]
        %v483 = vld [vmem:[%s3 + $0x24] sm:$0xf]
        %v484 = vld [vmem:[%s3 + $0x28] sm:$0xf]
        %v485 = vld [vmem:[%s3 + $0x2c] sm:$0xf]
        %v486 = vld [vmem:[%s3 + $0x30] sm:$0xf]
        %v487 = vld [vmem:[%s3 + $0x34] sm:$0xf]
        %v488 = vld [vmem:[%s3 + $0x38] sm:$0xf]
        %v489 = vld [vmem:[%s3 + $0x3c] sm:$0xf]
        %v490 = vld [vmem:[%s4] sm:$0x1]
        %v491 = vpack.c.bf16 %v459, %v458
        %v492 = vpack.c.bf16 %v461, %v460
        %v493 = vpack.c.bf16 %v463, %v462
        %v494 = vpack.c.bf16 %v465, %v464
        %v495 = vpack.c.bf16 %v467, %v466
        %v496 = vpack.c.bf16 %v469, %v468
        %v497 = vpack.c.bf16 %v471, %v470
        %v498 = vpack.c.bf16 %v473, %v472
        %v500 = vlaneseq
        %v501 = vshrl.u32 %v500, 7
        %v502 = vsub.s32 0, %v501
        %v503 = vrot.slane %v490, %v502
        %v521 = vunpack.c.l.b16 %v474
        %v522 = vunpack.c.l.b16 %v475
        %v523 = vunpack.c.l.b16 %v476
        %v524 = vunpack.c.l.b16 %v477
        %v525 = vunpack.c.l.b16 %v478
        %v526 = vunpack.c.l.b16 %v479
        %v527 = vunpack.c.l.b16 %v480
        %v528 = vunpack.c.l.b16 %v481
        %v529 = vunpack.c.l.b16 %v482
        %v530 = vunpack.c.l.b16 %v483
        %v531 = vunpack.c.l.b16 %v484
        %v532 = vunpack.c.l.b16 %v485
        %v533 = vunpack.c.l.b16 %v486
        %v534 = vunpack.c.l.b16 %v487
        %v535 = vunpack.c.l.b16 %v488
        %v536 = vunpack.c.l.b16 %v489
        %v537 = vpack.c.b16 %v522, %v521
        %v538 = vpack.c.b16 %v524, %v523
        %v539 = vpack.c.b16 %v526, %v525
        %v540 = vpack.c.b16 %v528, %v527
        %v541 = vpack.c.b16 %v530, %v529
        %v542 = vpack.c.b16 %v532, %v531
        %v543 = vpack.c.b16 %v534, %v533
        %v544 = vpack.c.b16 %v536, %v535
        %553 = vmatprep.subr.bf16.mxu0 0
        %554 = vmatpush1.bf16.msra.mxu0 %v537
        %555 = vmatprep.subr.bf16.mxu0 0
        %556 = vmatpush1.bf16.msra.mxu0 %v538
        %557 = vmatprep.subr.bf16.mxu0 0
        %558 = vmatpush1.bf16.msra.mxu0 %v539
        %559 = vmatprep.subr.bf16.mxu0 0
        %560 = vmatpush1.bf16.msra.mxu0 %v540
        %561 = vmatprep.subr.bf16.mxu0 0
        %562 = vmatpush1.bf16.msra.mxu0 %v541
        %563 = vmatprep.subr.bf16.mxu0 0
        %564 = vmatpush1.bf16.msra.mxu0 %v542
        %565 = vmatprep.subr.bf16.mxu0 0
        %566 = vmatpush1.bf16.msra.mxu0 %v543
        %567 = vmatprep.subr.bf16.mxu0 0
        %568 = vmatpush1.bf16.msra.mxu0 %v544
        %569 = vmatprep.subr.bf16.mxu0 0
        %570 = vmatpush1.bf16.msra.mxu0 0
        %571 = vmatprep.subr.bf16.mxu0 0
        %572 = vmatpush1.bf16.msra.mxu0 0
        %573 = vmatprep.subr.bf16.mxu0 0
        %574 = vmatpush1.bf16.msra.mxu0 0
        %575 = vmatprep.subr.bf16.mxu0 0
        %576 = vmatpush1.bf16.msra.mxu0 0
        %577 = vmatprep.subr.bf16.mxu0 0
        %578 = vmatpush1.bf16.msra.mxu0 0
        %579 = vmatprep.subr.bf16.mxu0 0
        %580 = vmatpush1.bf16.msra.mxu0 0
        %581 = vmatprep.subr.bf16.mxu0 0
        %582 = vmatpush1.bf16.msra.mxu0 0
        %583 = vmatprep.subr.bf16.mxu0 0
        %584 = vmatpush1.bf16.msra.mxu0 0
        %585 = vmatprep.mubr.bf16.mxu0 0
        %586 = vmatmul.mubr.bf16.gmra.mrb[0].mxu0 %v491
        %v587 = vpop.f32.mrb[0].mxu0
        %v588 = vadd.f32 %v503, %v587
        %v589 = vpop.f32.mrb[0].mxu0
        %v590 = vpop.f32.mrb[0].mxu0
        %v591 = vadd.f32 %v503, %v590
        %v592 = vpop.f32.mrb[0].mxu0
        %593 = vmatprep.mubr.bf16.mxu0 0
        %594 = vmatmul.mubr.bf16.gmra.mrb[0].mxu0 %v492
        %v595 = vpop.f32.mrb[0].mxu0
        %v596 = vadd.f32 %v503, %v595
        %v597 = vpop.f32.mrb[0].mxu0
        %v598 = vpop.f32.mrb[0].mxu0
        %v599 = vadd.f32 %v503, %v598
        %v600 = vpop.f32.mrb[0].mxu0
        %601 = vmatprep.mubr.bf16.mxu0 0
        %602 = vmatmul.mubr.bf16.gmra.mrb[0].mxu0 %v493
        %v603 = vpop.f32.mrb[0].mxu0
        %v604 = vadd.f32 %v503, %v603
        %v605 = vpop.f32.mrb[0].mxu0
        %v606 = vpop.f32.mrb[0].mxu0
        %v607 = vadd.f32 %v503, %v606
        %v608 = vpop.f32.mrb[0].mxu0
        %609 = vmatprep.mubr.bf16.mxu0 0
        %610 = vmatmul.mubr.bf16.gmra.mrb[0].mxu0 %v494
        %v611 = vpop.f32.mrb[0].mxu0
        %v612 = vadd.f32 %v503, %v611
        %v613 = vpop.f32.mrb[0].mxu0
        %v614 = vpop.f32.mrb[0].mxu0
        %v615 = vadd.f32 %v503, %v614
        %v616 = vpop.f32.mrb[0].mxu0
        %617 = vmatprep.mubr.bf16.mxu0 0
        %618 = vmatmul.mubr.bf16.gmra.mrb[0].mxu0 %v495
        %v619 = vpop.f32.mrb[0].mxu0
        %v620 = vadd.f32 %v503, %v619
        %v621 = vpop.f32.mrb[0].mxu0
        %v622 = vpop.f32.mrb[0].mxu0
        %v623 = vadd.f32 %v503, %v622
        %v624 = vpop.f32.mrb[0].mxu0
        %625 = vmatprep.mubr.bf16.mxu0 0
        %626 = vmatmul.mubr.bf16.gmra.mrb[0].mxu0 %v496
        %v627 = vpop.f32.mrb[0].mxu0
        %v628 = vadd.f32 %v503, %v627
        %v629 = vpop.f32.mrb[0].mxu0
        %v630 = vpop.f32.mrb[0].mxu0
        %v631 = vadd.f32 %v503, %v630
        %v632 = vpop.f32.mrb[0].mxu0
        %633 = vmatprep.mubr.bf16.mxu0 0
        %634 = vmatmul.mubr.bf16.gmra.mrb[0].mxu0 %v497
        %v635 = vpop.f32.mrb[0].mxu0
        %v636 = vadd.f32 %v503, %v635
        %v637 = vpop.f32.mrb[0].mxu0
        %v638 = vpop.f32.mrb[0].mxu0
        %v639 = vadd.f32 %v503, %v638
        %v640 = vpop.f32.mrb[0].mxu0
        %641 = vmatprep.mubr.bf16.mxu0 0
        %642 = vmatmul.mubr.bf16.gmra.mrb[0].mxu0 %v498
        %v643 = vpop.f32.mrb[0].mxu0
        %v644 = vadd.f32 %v503, %v643
        %v645 = vpop.f32.mrb[0].mxu0
        %v646 = vpop.f32.mrb[0].mxu0
        %v647 = vadd.f32 %v503, %v646
        %v648 = vpop.f32.mrb[0].mxu0
        %649 = vdwg.mxu0
        %v650 = vmul.f32 %v588, 0.2
        %v651 = vmul.f32 %v591, 0.2
        %v652 = vmul.f32 %v596, 0.2
        %v653 = vmul.f32 %v599, 0.2
        %v654 = vmul.f32 %v604, 0.2
        %v655 = vmul.f32 %v607, 0.2
        %v656 = vmul.f32 %v612, 0.2
        %v657 = vmul.f32 %v615, 0.2
        %v658 = vmul.f32 %v620, 0.2
        %v659 = vmul.f32 %v623, 0.2
        %v660 = vmul.f32 %v628, 0.2
        %v661 = vmul.f32 %v631, 0.2
        %v662 = vmul.f32 %v636, 0.2
        %v663 = vmul.f32 %v639, 0.2
        %v664 = vmul.f32 %v644, 0.2
        %v665 = vmul.f32 %v647, 0.2
        %v666 = vmax.f32 %v588, %v650
        %v667 = vmax.f32 %v591, %v651
        %v668 = vmax.f32 %v596, %v652
        %v669 = vmax.f32 %v599, %v653
        %v670 = vmax.f32 %v604, %v654
        %v671 = vmax.f32 %v607, %v655
        %v672 = vmax.f32 %v612, %v656
        %v673 = vmax.f32 %v615, %v657
        %v674 = vmax.f32 %v620, %v658
        %v675 = vmax.f32 %v623, %v659
        %v676 = vmax.f32 %v628, %v660
        %v677 = vmax.f32 %v631, %v661
        %v678 = vmax.f32 %v636, %v662
        %v679 = vmax.f32 %v639, %v663
        %v680 = vmax.f32 %v644, %v664
        %v681 = vmax.f32 %v647, %v665
        %v682 = vld [vmem:[%s5] sm:$0xf]
        %v683 = vld [vmem:[#allocation2] sm:$0x1]
        %v684 = vpack.c.bf16 %v667, %v666
        %v685 = vpack.c.bf16 %v669, %v668
        %v686 = vpack.c.bf16 %v671, %v670
        %v687 = vpack.c.bf16 %v673, %v672
        %v688 = vpack.c.bf16 %v675, %v674
        %v689 = vpack.c.bf16 %v677, %v676
        %v690 = vpack.c.bf16 %v679, %v678
        %v691 = vpack.c.bf16 %v681, %v680
        %692 = vmatprep.subr.bf16.mxu0 0
        %693 = vmatpush1.bf16.xpose.msra.mxu0 %v684
        %694 = vmatprep.subr.bf16.mxu0 0
        %695 = vmatpush1.bf16.xpose.msra.mxu0 %v685
        %696 = vmatprep.subr.bf16.mxu0 0
        %697 = vmatpush1.bf16.xpose.msra.mxu0 %v686
        %698 = vmatprep.subr.bf16.mxu0 0
        %699 = vmatpush1.bf16.xpose.msra.mxu0 %v687
        %700 = vmatprep.subr.bf16.mxu0 0
        %701 = vmatpush1.bf16.xpose.msra.mxu0 %v688
        %702 = vmatprep.subr.bf16.mxu0 0
        %703 = vmatpush1.bf16.xpose.msra.mxu0 %v689
        %704 = vmatprep.subr.bf16.mxu0 0
        %705 = vmatpush1.bf16.xpose.msra.mxu0 %v690
        %706 = vmatprep.subr.bf16.mxu0 0
        %707 = vmatpush1.bf16.xpose.msra.mxu0 %v691
        %708 = vmatprep.subr.bf16.mxu0 0
        %709 = vmatpush1.bf16.xpose.msra.mxu0 0
        %710 = vmatprep.subr.bf16.mxu0 0
        %711 = vmatpush1.bf16.xpose.msra.mxu0 0
        %712 = vmatprep.subr.bf16.mxu0 0
        %713 = vmatpush1.bf16.xpose.msra.mxu0 0
        %714 = vmatprep.subr.bf16.mxu0 0
        %715 = vmatpush1.bf16.xpose.msra.mxu0 0
        %716 = vmatprep.subr.bf16.mxu0 0
        %717 = vmatpush1.bf16.xpose.msra.mxu0 0
        %718 = vmatprep.subr.bf16.mxu0 0
        %719 = vmatpush1.bf16.xpose.msra.mxu0 0
        %720 = vmatprep.subr.bf16.mxu0 0
        %721 = vmatpush1.bf16.xpose.msra.mxu0 0
        %722 = vmatprep.subr.bf16.mxu0 0
        %723 = vmatpush1.bf16.xpose.msra.mxu0 0
        %724 = vmatprep.mubr.bf16.mxu0 0
        %725 = vmatmul.mubr.bf16.gmra.mrb[0].mxu0 %v682
        %v726 = vpop.f32.mrb[0].mxu0
        %v727 = vadd.f32 0.0, %v726
        %v728 = vpop.f32.mrb[0].mxu0
        %v729 = vpop.f32.mrb[0].mxu0
        %v730 = vpop.f32.mrb[0].mxu0
        %731 = vdwg.mxu0
        %733 = vset.pattern.permute.xlu0 0
        %734 = vperm.xlu0 %733, %v683
        %v735 = vpop.permute.xlu0 %734
        %v737 = vlaneseq
        %v738 = vshrl.u32 %v737, 7
        %v739 = vsub.s32 0, %v738
        %v740 = vrot.slane %v735, %v739
        %v741 = vadd.f32 %v727, %v740
        %742 = vst [vmem:[%s273] sm:$0x1] %v741
        %s743 = sand.u32 %s183, 1
        %s744 = scalar_lea.sflag [#allocation4], %s743
        %s745 = sand.u32 %s183, 1
        %s746 = scalar_lea.vmem [#allocation3], %s745
        // Predicated region
        $region49: #{tpu_custom_call.1} parent=47 // pred_check
          %p747 = pneg %p193
        $region50: #{tpu_custom_call.1} parent=47 // pred_check_branch
          %749 = sbr.rel (%p747) target = $region52
        $region51: #{tpu_custom_call.1} parent=47 // pred_region
          %s751 = ssub.s32 16, 16
          %752 = vsyncadd %s744, %s751
          %s753 = smul.addr %s23, 16
          %s754 = scalar_lea.hbm %s7, %s753
          %s756 = sshll.u32 %s746, 4
          %s757 = int_to_ptr.vmem [resolvable:$true] %s756
          %759 = dma.vmem_to_hbm [thread:$0]  %s757, 16, %s754, %s744
        $region52: #{tpu_custom_call.1} parent=47 // pred_fallthru
          _
      $region48: #{tpu_custom_call.1} parent=5 // pred_fallthru
        _
      %p760 = scmp.le.s32.totalorder 2, %s18
      // Predicated region
      $region53: #{tpu_custom_call.1} parent=5 // pred_check
        %p761 = pneg %p760
      $region54: #{tpu_custom_call.1} parent=5 // pred_check_branch
        %763 = sbr.rel (%p761) target = $region56
      $region55: #{tpu_custom_call.1} parent=5 // pred_region
        %s764 = ssub.s32 %s18, 2
        // Predicated region
        $region57: #{tpu_custom_call.1} parent=55 // pred_check
          %p765 = pneg %p199
        $region58: #{tpu_custom_call.1} parent=55 // pred_check_branch
          %767 = sbr.rel (%p765) target = $region60
        $region59: #{tpu_custom_call.1} parent=55 // pred_region
          %s768 = sand.u32 %s184, 1
          %s769 = scalar_lea.sflag [#allocation4], %s768
          %s770 = sand.u32 %s184, 1
          %s771 = scalar_lea.vmem [#allocation3], %s770
          %772 = dma.done %s769, 16
        $region60: #{tpu_custom_call.1} parent=55 // pred_fallthru
          _
      $region56: #{tpu_custom_call.1} parent=5 // pred_fallthru
        _
    $region6: #{tpu_custom_call.1} parent=1 // loop_footer
      %s22 = sadd.s32 1, %s18
    $region7: #{tpu_custom_call.1} parent=1 // loop_footer_branch
      %17 = sbr.rel target = $region3
    $region8: #{tpu_custom_call.1} parent=1 // loop_exit
      _
    %773 = vsyncpa [#allocation4], 1
    %s774 = scalar_lea.sflag [#allocation4], 1
    %775 = vsyncpa %s774, 1

</llo_original>
